<compile_context>
chip_gen: v7x
topology: tpu7x:2x2x1
jax: 0.10.0
libtpu: 0.0.40
codegen_flags: <defaults>
</compile_context>

<pallas_src>
import functools

import jax
import jax.numpy as jnp
from jax.experimental import pallas as pl
from jax.experimental.pallas import tpu as pltpu

_EPS = 1e-5
_NEG_SLOPE = 0.01
_LANE = 128


def _round_up(x, m):
    return (x + m - 1) // m * m


def _pad2(a, rows, cols):
    r, c = a.shape
    if r == rows and c == cols:
        return a
    return jnp.pad(a, ((0, rows - r), (0, cols - c)))


def _p_net_kernel(x_ref, w1_ref, b1_ref, gamma_ref, beta_ref, w2_ref, b2_ref,
                  o_ref, sum_ref, sumsq_ref, scale_ref, shift_ref,
                  *, inv_batch):
    p = pl.program_id(0)   # 0 = batch-statistics pass, 1 = apply pass
    b = pl.program_id(1)   # batch-tile index

    # First linear, shared by both passes. bf16 operands, f32 accumulate (MXU).
    h = jnp.dot(x_ref[...], w1_ref[...],
                preferred_element_type=jnp.float32) + b1_ref[...]

    @pl.when(jnp.logical_and(p == 0, b == 0))
    def _():
        sum_ref[...] = jnp.zeros_like(sum_ref)
        sumsq_ref[...] = jnp.zeros_like(sumsq_ref)

    @pl.when(p == 0)
    def _():
        sum_ref[...] += jnp.sum(h, axis=0, keepdims=True)
        sumsq_ref[...] += jnp.sum(h * h, axis=0, keepdims=True)
        # Keep the (revisited) output buffer deterministic during the stats
        # pass; the real values are stored in pass 1.
        o_ref[...] = jnp.zeros_like(o_ref)

    @pl.when(jnp.logical_and(p == 1, b == 0))
    def _():
        mean = sum_ref[...] * inv_batch
        var = sumsq_ref[...] * inv_batch - mean * mean      # biased variance
        scale = jax.lax.rsqrt(var + _EPS) * gamma_ref[...]  # folded BN scale
        scale_ref[...] = scale
        shift_ref[...] = beta_ref[...] - mean * scale       # folded BN shift

    @pl.when(p == 1)
    def _():
        hn = h * scale_ref[...] + shift_ref[...]            # BN as one FMA
        hn = jnp.where(hn > 0, hn, _NEG_SLOPE * hn)         # LeakyReLU(0.01)
        out = jnp.dot(hn.astype(w2_ref.dtype), w2_ref[...],
                      preferred_element_type=jnp.float32) + b2_ref[...]
        o_ref[...] = out.astype(o_ref.dtype)


def p_net_forward(x, params):
    """x: (B, latent_dim) float32.  params: dict of kernel weights.

    Weights are stored transposed relative to PyTorch (in_features,
    out_features) so the kernel computes plain x @ W + b on the MXU.
    """
    w1, b1 = params["w1"], params["b1"]
    gamma, beta = params["gamma"], params["beta"]
    w2, b2 = params["w2"], params["b2"]

    B, L = x.shape
    N = w1.shape[1]
    P = w2.shape[1]

    Lp = _round_up(L, _LANE)
    Np = _round_up(N, _LANE)
    Pp = _round_up(P, _LANE)

    # Batch tile: largest power-of-two tile (>= 8 sublanes) dividing B,
    # otherwise the whole batch as a single tile.
    tb = B
    for cand in (256, 128, 64, 32, 16, 8):
        if B % cand == 0:
            tb = cand
            break
    nb = B // tb

    # Zero-pad feature dims to lane width; bf16 for MXU operands.
    x_p = _pad2(x, B, Lp).astype(jnp.bfloat16)
    w1_p = _pad2(w1, Lp, Np).astype(jnp.bfloat16)
    w2_p = _pad2(w2, Np, Pp).astype(jnp.bfloat16)
    b1_p = _pad2(b1, 1, Np).astype(jnp.float32)
    # gamma padded with zeros -> padded hidden channels stay exactly 0 after BN
    # (scale = 0, shift = 0), so they contribute nothing to the second matmul.
    gamma_p = _pad2(gamma, 1, Np).astype(jnp.float32)
    beta_p = _pad2(beta, 1, Np).astype(jnp.float32)
    b2_p = _pad2(b2, 1, Pp).astype(jnp.float32)

    kernel = functools.partial(_p_net_kernel, inv_batch=1.0 / float(B))

    flops = 2 * B * Lp * Np * 2 + 2 * B * Np * Pp          # matmul1 (x2) + matmul2
    bytes_accessed = (2 * x_p.size * 2                     # x read twice (bf16)
                      + w1_p.size * 2 + w2_p.size * 2      # resident weights
                      + 4 * (b1_p.size + gamma_p.size + beta_p.size + b2_p.size)
                      + 4 * B * Pp)                        # f32 output
    cost = pl.CostEstimate(flops=flops, transcendentals=Np,
                           bytes_accessed=bytes_accessed)

    out_p = pl.pallas_call(
        kernel,
        out_shape=jax.ShapeDtypeStruct((B, Pp), jnp.float32),
        grid_spec=pltpu.PrefetchScalarGridSpec(
            num_scalar_prefetch=0,
            grid=(2, nb),                                   # (pass, batch tile)
            in_specs=[
                pl.BlockSpec((tb, Lp), lambda p, b: (b, 0)),   # x
                pl.BlockSpec((Lp, Np), lambda p, b: (0, 0)),   # w1 (resident)
                pl.BlockSpec((1, Np), lambda p, b: (0, 0)),    # b1
                pl.BlockSpec((1, Np), lambda p, b: (0, 0)),    # gamma
                pl.BlockSpec((1, Np), lambda p, b: (0, 0)),    # beta
                pl.BlockSpec((Np, Pp), lambda p, b: (0, 0)),   # w2 (resident)
                pl.BlockSpec((1, Pp), lambda p, b: (0, 0)),    # b2
            ],
            out_specs=pl.BlockSpec((tb, Pp), lambda p, b: (b, 0)),
            scratch_shapes=[pltpu.VMEM((1, Np), jnp.float32)] * 4,
        ),
        compiler_params=pltpu.CompilerParams(
            dimension_semantics=("arbitrary", "arbitrary"),
            vmem_limit_bytes=32 * 1024 * 1024,
        ),
        cost_estimate=cost,
    )(x_p, w1_p, b1_p, gamma_p, beta_p, w2_p, b2_p)

    return out_p[:, :P]


def init_params(key, latent_dim, hidden_dim, out_phen_dim):
    """Deterministic synthetic init mirroring PyTorch default shapes."""
    k1, k2, k3, k4, k5, k6 = jax.random.split(key, 6)
    s1 = 1.0 / jnp.sqrt(latent_dim)
    s2 = 1.0 / jnp.sqrt(hidden_dim)
    return {
        "w1": jax.random.uniform(k1, (latent_dim, hidden_dim), jnp.float32, -s1, s1),
        "b1": jax.random.uniform(k2, (1, hidden_dim), jnp.float32, -s1, s1),
        "gamma": 1.0 + 0.1 * jax.random.normal(k3, (1, hidden_dim), jnp.float32),
        "beta": 0.1 * jax.random.normal(k4, (1, hidden_dim), jnp.float32),
        "w2": jax.random.uniform(k5, (hidden_dim, out_phen_dim), jnp.float32, -s2, s2),
        "b2": jax.random.uniform(k6, (1, out_phen_dim), jnp.float32, -s2, s2),
    }


def p_net_reference(x, params):
    """Pure-JAX f32 reference for correctness check."""
    h = x @ params["w1"] + params["b1"]
    mean = jnp.mean(h, axis=0, keepdims=True)
    var = jnp.mean((h - mean) ** 2, axis=0, keepdims=True)
    h = (h - mean) / jnp.sqrt(var + _EPS) * params["gamma"] + params["beta"]
    h = jnp.where(h > 0, h, _NEG_SLOPE * h)
    return h @ params["w2"] + params["b2"]


if __name__ == "__main__":
    # Small shapes consistent with the module: latent_dim -> N -> out_phen_dim
    batch = 8
    latent_dim = 16       # vabs.latent_dim
    hidden_dim = 32       # N (vabs.d_hidden_dim)
    out_phen_dim = 8      # vabs.n_phens_to_predict

    key = jax.random.PRNGKey(0)
    kx, kp = jax.random.split(key)
    x = jax.random.normal(kx, (batch, latent_dim), jnp.float32)
    params = init_params(kp, latent_dim, hidden_dim, out_phen_dim)

    out = jax.block_until_ready(p_net_forward(x, params))
    ref = p_net_reference(x, params)

    assert out.shape == (batch, out_phen_dim)
    # bf16 matmul operands -> loose tolerance vs the pure-f32 reference.
    err = float(jnp.max(jnp.abs(out - ref)))
    assert jnp.allclose(out, ref, atol=5e-2, rtol=5e-2), (
        f"mismatch vs reference: max abs err {err}")

    print("KERNEL_OK")
</pallas_src>

<mosaic_0001>
module attributes {stable_mosaic.version = 11 : i64} {
  func.func @_p_net_kernel(%arg0: i32, %arg1: i32, %arg2: memref<8x128xbf16, #tpu.memory_space<vmem>>, %arg3: memref<128x128xbf16, #tpu.memory_space<vmem>>, %arg4: memref<1x128xf32, #tpu.memory_space<vmem>>, %arg5: memref<1x128xf32, #tpu.memory_space<vmem>>, %arg6: memref<1x128xf32, #tpu.memory_space<vmem>>, %arg7: memref<128x128xbf16, #tpu.memory_space<vmem>>, %arg8: memref<1x128xf32, #tpu.memory_space<vmem>>, %arg9: memref<8x128xf32, #tpu.memory_space<vmem>>, %arg10: memref<1x128xf32, #tpu.memory_space<vmem>>, %arg11: memref<1x128xf32, #tpu.memory_space<vmem>>, %arg12: memref<1x128xf32, #tpu.memory_space<vmem>>, %arg13: memref<1x128xf32, #tpu.memory_space<vmem>>) attributes {dimension_semantics = [#tpu.dimension_semantics<arbitrary>, #tpu.dimension_semantics<arbitrary>], iteration_bounds = array<i64: 2, 1>, scalar_prefetch = 0 : i64, scratch_operands = 4 : i64, tpu.core_type = #tpu.core_type<tc>, window_params = [{transform_indices = @transform_0, window_bounds = array<i64: 8, 128>}, {pipeline_mode = #tpu.pipeline_mode<synchronous>, transform_indices = @transform_1, window_bounds = array<i64: 128, 128>}, {pipeline_mode = #tpu.pipeline_mode<synchronous>, transform_indices = @transform_2, window_bounds = array<i64: 1, 128>}, {pipeline_mode = #tpu.pipeline_mode<synchronous>, transform_indices = @transform_3, window_bounds = array<i64: 1, 128>}, {pipeline_mode = #tpu.pipeline_mode<synchronous>, transform_indices = @transform_4, window_bounds = array<i64: 1, 128>}, {pipeline_mode = #tpu.pipeline_mode<synchronous>, transform_indices = @transform_5, window_bounds = array<i64: 128, 128>}, {pipeline_mode = #tpu.pipeline_mode<synchronous>, transform_indices = @transform_6, window_bounds = array<i64: 1, 128>}, {transform_indices = @transform_7, window_bounds = array<i64: 8, 128>}]} {
    %c0 = arith.constant 0 : index
    %c0_0 = arith.constant 0 : index
    %0 = vector.load %arg2[%c0, %c0_0] : memref<8x128xbf16, #tpu.memory_space<vmem>>, vector<8x128xbf16>
    %c0_1 = arith.constant 0 : index
    %c0_2 = arith.constant 0 : index
    %1 = vector.load %arg3[%c0_1, %c0_2] : memref<128x128xbf16, #tpu.memory_space<vmem>>, vector<128x128xbf16>
    %cst = arith.constant dense<0.000000e+00> : vector<8x128xf32>
    %2 = tpu.matmul %0, %1, %cst {dimension_numbers = #tpu.dot_dimension_numbers<[1], [0], [0], [1], [0, 0, 1, 1], [], []>} : vector<8x128xbf16>, vector<128x128xbf16>, vector<8x128xf32> -> vector<8x128xf32>
    %c0_3 = arith.constant 0 : index
    %c0_4 = arith.constant 0 : index
    %3 = vector.load %arg4[%c0_3, %c0_4] : memref<1x128xf32, #tpu.memory_space<vmem>>, vector<1x128xf32>
    %4 = vector.broadcast %3 : vector<1x128xf32> to vector<8x128xf32>
    %5 = arith.addf %2, %4 : vector<8x128xf32>
    %c0_i32 = arith.constant 0 : i32
    %6 = arith.cmpi eq, %arg0, %c0_i32 : i32
    %c0_i32_5 = arith.constant 0 : i32
    %7 = arith.cmpi eq, %arg1, %c0_i32_5 : i32
    %8 = arith.andi %6, %7 : i1
    %9 = arith.extui %8 : i1 to i32
    %c0_i32_6 = arith.constant 0 : i32
    %10 = arith.cmpi ne, %9, %c0_i32_6 : i32
    scf.if %10 {
      %cst_13 = arith.constant 0.000000e+00 : f32
      %22 = vector.broadcast %cst_13 : f32 to vector<1x128xf32>
      %c0_14 = arith.constant 0 : index
      %c0_15 = arith.constant 0 : index
      %23 = vector.load %arg10[%c0_14, %c0_15] : memref<1x128xf32, #tpu.memory_space<vmem>>, vector<1x128xf32>
      tpu.vector_store %arg10[%c0_14, %c0_15], %22 {strides = array<i32>} : memref<1x128xf32, #tpu.memory_space<vmem>>, vector<1x128xf32>,
      %cst_16 = arith.constant 0.000000e+00 : f32
      %24 = vector.broadcast %cst_16 : f32 to vector<1x128xf32>
      %c0_17 = arith.constant 0 : index
      %c0_18 = arith.constant 0 : index
      %25 = vector.load %arg11[%c0_17, %c0_18] : memref<1x128xf32, #tpu.memory_space<vmem>>, vector<1x128xf32>
      tpu.vector_store %arg11[%c0_17, %c0_18], %24 {strides = array<i32>} : memref<1x128xf32, #tpu.memory_space<vmem>>, vector<1x128xf32>,
    } else {
    }
    %c0_i32_7 = arith.constant 0 : i32
    %11 = arith.cmpi eq, %arg0, %c0_i32_7 : i32
    %12 = arith.extui %11 : i1 to i32
    %c0_i32_8 = arith.constant 0 : i32
    %13 = arith.cmpi ne, %12, %c0_i32_8 : i32
    scf.if %13 {
      %c0_13 = arith.constant 0 : index
      %c0_14 = arith.constant 0 : index
      %22 = vector.load %arg10[%c0_13, %c0_14] : memref<1x128xf32, #tpu.memory_space<vmem>>, vector<1x128xf32>
      %cst_15 = arith.constant dense<0.000000e+00> : vector<128xf32>
      %23 = vector.multi_reduction <add>, %5, %cst_15 [0] : vector<8x128xf32> to vector<128xf32>
      %24 = vector.shape_cast %23 : vector<128xf32> to vector<1x128xf32>
      %25 = arith.addf %22, %24 : vector<1x128xf32>
      %c0_16 = arith.constant 0 : index
      %c0_17 = arith.constant 0 : index
      %26 = vector.load %arg10[%c0_16, %c0_17] : memref<1x128xf32, #tpu.memory_space<vmem>>, vector<1x128xf32>
      tpu.vector_store %arg10[%c0_16, %c0_17], %25 {strides = array<i32>} : memref<1x128xf32, #tpu.memory_space<vmem>>, vector<1x128xf32>,
      %c0_18 = arith.constant 0 : index
      %c0_19 = arith.constant 0 : index
      %27 = vector.load %arg11[%c0_18, %c0_19] : memref<1x128xf32, #tpu.memory_space<vmem>>, vector<1x128xf32>
      %28 = arith.mulf %5, %5 : vector<8x128xf32>
      %cst_20 = arith.constant dense<0.000000e+00> : vector<128xf32>
      %29 = vector.multi_reduction <add>, %28, %cst_20 [0] : vector<8x128xf32> to vector<128xf32>
      %30 = vector.shape_cast %29 : vector<128xf32> to vector<1x128xf32>
      %31 = arith.addf %27, %30 : vector<1x128xf32>
      %c0_21 = arith.constant 0 : index
      %c0_22 = arith.constant 0 : index
      %32 = vector.load %arg11[%c0_21, %c0_22] : memref<1x128xf32, #tpu.memory_space<vmem>>, vector<1x128xf32>
      tpu.vector_store %arg11[%c0_21, %c0_22], %31 {strides = array<i32>} : memref<1x128xf32, #tpu.memory_space<vmem>>, vector<1x128xf32>,
      %cst_23 = arith.constant 0.000000e+00 : f32
      %33 = vector.broadcast %cst_23 : f32 to vector<8x128xf32>
      %c0_24 = arith.constant 0 : index
      %c0_25 = arith.constant 0 : index
      %34 = vector.load %arg9[%c0_24, %c0_25] : memref<8x128xf32, #tpu.memory_space<vmem>>, vector<8x128xf32>
      tpu.vector_store %arg9[%c0_24, %c0_25], %33 {strides = array<i32>} : memref<8x128xf32, #tpu.memory_space<vmem>>, vector<8x128xf32>,
    } else {
    }
    %c1_i32 = arith.constant 1 : i32
    %14 = arith.cmpi eq, %arg0, %c1_i32 : i32
    %c0_i32_9 = arith.constant 0 : i32
    %15 = arith.cmpi eq, %arg1, %c0_i32_9 : i32
    %16 = arith.andi %14, %15 : i1
    %17 = arith.extui %16 : i1 to i32
    %c0_i32_10 = arith.constant 0 : i32
    %18 = arith.cmpi ne, %17, %c0_i32_10 : i32
    scf.if %18 {
      %c0_13 = arith.constant 0 : index
      %c0_14 = arith.constant 0 : index
      %22 = vector.load %arg10[%c0_13, %c0_14] : memref<1x128xf32, #tpu.memory_space<vmem>>, vector<1x128xf32>
      %cst_15 = arith.constant 1.250000e-01 : f32
      %23 = vector.broadcast %cst_15 : f32 to vector<1x128xf32>
      %24 = arith.mulf %22, %23 : vector<1x128xf32>
      %c0_16 = arith.constant 0 : index
      %c0_17 = arith.constant 0 : index
      %25 = vector.load %arg11[%c0_16, %c0_17] : memref<1x128xf32, #tpu.memory_space<vmem>>, vector<1x128xf32>
      %cst_18 = arith.constant 1.250000e-01 : f32
      %26 = vector.broadcast %cst_18 : f32 to vector<1x128xf32>
      %27 = arith.mulf %25, %26 : vector<1x128xf32>
      %28 = arith.mulf %24, %24 : vector<1x128xf32>
      %29 = arith.subf %27, %28 : vector<1x128xf32>
      %cst_19 = arith.constant 9.99999974E-6 : f32
      %30 = vector.broadcast %cst_19 : f32 to vector<1x128xf32>
      %31 = arith.addf %29, %30 : vector<1x128xf32>
      %32 = math.rsqrt %31 : vector<1x128xf32>
      %c0_20 = arith.constant 0 : index
      %c0_21 = arith.constant 0 : index
      %33 = vector.load %arg5[%c0_20, %c0_21] : memref<1x128xf32, #tpu.memory_space<vmem>>, vector<1x128xf32>
      %34 = arith.mulf %32, %33 : vector<1x128xf32>
      %c0_22 = arith.constant 0 : index
      %c0_23 = arith.constant 0 : index
      %35 = vector.load %arg12[%c0_22, %c0_23] : memref<1x128xf32, #tpu.memory_space<vmem>>, vector<1x128xf32>
      tpu.vector_store %arg12[%c0_22, %c0_23], %34 {strides = array<i32>} : memref<1x128xf32, #tpu.memory_space<vmem>>, vector<1x128xf32>,
      %c0_24 = arith.constant 0 : index
      %c0_25 = arith.constant 0 : index
      %36 = vector.load %arg6[%c0_24, %c0_25] : memref<1x128xf32, #tpu.memory_space<vmem>>, vector<1x128xf32>
      %37 = arith.mulf %24, %34 : vector<1x128xf32>
      %38 = arith.subf %36, %37 : vector<1x128xf32>
      %c0_26 = arith.constant 0 : index
      %c0_27 = arith.constant 0 : index
      %39 = vector.load %arg13[%c0_26, %c0_27] : memref<1x128xf32, #tpu.memory_space<vmem>>, vector<1x128xf32>
      tpu.vector_store %arg13[%c0_26, %c0_27], %38 {strides = array<i32>} : memref<1x128xf32, #tpu.memory_space<vmem>>, vector<1x128xf32>,
    } else {
    }
    %c1_i32_11 = arith.constant 1 : i32
    %19 = arith.cmpi eq, %arg0, %c1_i32_11 : i32
    %20 = arith.extui %19 : i1 to i32
    %c0_i32_12 = arith.constant 0 : i32
    %21 = arith.cmpi ne, %20, %c0_i32_12 : i32
    scf.if %21 {
      %c0_13 = arith.constant 0 : index
      %c0_14 = arith.constant 0 : index
      %22 = vector.load %arg12[%c0_13, %c0_14] : memref<1x128xf32, #tpu.memory_space<vmem>>, vector<1x128xf32>
      %23 = vector.broadcast %22 : vector<1x128xf32> to vector<8x128xf32>
      %24 = arith.mulf %5, %23 : vector<8x128xf32>
      %c0_15 = arith.constant 0 : index
      %c0_16 = arith.constant 0 : index
      %25 = vector.load %arg13[%c0_15, %c0_16] : memref<1x128xf32, #tpu.memory_space<vmem>>, vector<1x128xf32>
      %26 = vector.broadcast %25 : vector<1x128xf32> to vector<8x128xf32>
      %27 = arith.addf %24, %26 : vector<8x128xf32>
      %cst_17 = arith.constant 0.000000e+00 : f32
      %28 = vector.broadcast %cst_17 : f32 to vector<8x128xf32>
      %29 = arith.cmpf ogt, %27, %28 : vector<8x128xf32>
      %cst_18 = arith.constant 0.00999999977 : f32
      %30 = vector.broadcast %cst_18 : f32 to vector<8x128xf32>
      %31 = arith.mulf %30, %27 : vector<8x128xf32>
      %32 = arith.select %29, %27, %31 : vector<8x128xi1>, vector<8x128xf32>
      %33 = arith.truncf %32 : vector<8x128xf32> to vector<8x128xbf16>
      %c0_19 = arith.constant 0 : index
      %c0_20 = arith.constant 0 : index
      %34 = vector.load %arg7[%c0_19, %c0_20] : memref<128x128xbf16, #tpu.memory_space<vmem>>, vector<128x128xbf16>
      %cst_21 = arith.constant dense<0.000000e+00> : vector<8x128xf32>
      %35 = tpu.matmul %33, %34, %cst_21 {dimension_numbers = #tpu.dot_dimension_numbers<[1], [0], [0], [1], [0, 0, 1, 1], [], []>} : vector<8x128xbf16>, vector<128x128xbf16>, vector<8x128xf32> -> vector<8x128xf32>
      %c0_22 = arith.constant 0 : index
      %c0_23 = arith.constant 0 : index
      %36 = vector.load %arg8[%c0_22, %c0_23] : memref<1x128xf32, #tpu.memory_space<vmem>>, vector<1x128xf32>
      %37 = vector.broadcast %36 : vector<1x128xf32> to vector<8x128xf32>
      %38 = arith.addf %35, %37 : vector<8x128xf32>
      %c0_24 = arith.constant 0 : index
      %c0_25 = arith.constant 0 : index
      %39 = vector.load %arg9[%c0_24, %c0_25] : memref<8x128xf32, #tpu.memory_space<vmem>>, vector<8x128xf32>
      tpu.vector_store %arg9[%c0_24, %c0_25], %38 {strides = array<i32>} : memref<8x128xf32, #tpu.memory_space<vmem>>, vector<8x128xf32>,
    } else {
    }
    return
  }
  func.func @transform_0(%arg0: i32, %arg1: i32) -> (i32, i32) {
    %c0_i32 = arith.constant 0 : i32
    %c0_i32_0 = arith.constant 0 : i32
    return %arg1, %c0_i32 : i32, i32
  }
  func.func @transform_1(%arg0: i32, %arg1: i32) -> (i32, i32) {
    %c0_i32 = arith.constant 0 : i32
    %c0_i32_0 = arith.constant 0 : i32
    %c0_i32_1 = arith.constant 0 : i32
    return %c0_i32, %c0_i32_0 : i32, i32
  }
  func.func @transform_2(%arg0: i32, %arg1: i32) -> (i32, i32) {
    %c0_i32 = arith.constant 0 : i32
    %c0_i32_0 = arith.constant 0 : i32
    %c0_i32_1 = arith.constant 0 : i32
    return %c0_i32, %c0_i32_0 : i32, i32
  }
  func.func @transform_3(%arg0: i32, %arg1: i32) -> (i32, i32) {
    %c0_i32 = arith.constant 0 : i32
    %c0_i32_0 = arith.constant 0 : i32
    %c0_i32_1 = arith.constant 0 : i32
    return %c0_i32, %c0_i32_0 : i32, i32
  }
  func.func @transform_4(%arg0: i32, %arg1: i32) -> (i32, i32) {
    %c0_i32 = arith.constant 0 : i32
    %c0_i32_0 = arith.constant 0 : i32
    %c0_i32_1 = arith.constant 0 : i32
    return %c0_i32, %c0_i32_0 : i32, i32
  }
  func.func @transform_5(%arg0: i32, %arg1: i32) -> (i32, i32) {
    %c0_i32 = arith.constant 0 : i32
    %c0_i32_0 = arith.constant 0 : i32
    %c0_i32_1 = arith.constant 0 : i32
    return %c0_i32, %c0_i32_0 : i32, i32
  }
  func.func @transform_6(%arg0: i32, %arg1: i32) -> (i32, i32) {
    %c0_i32 = arith.constant 0 : i32
    %c0_i32_0 = arith.constant 0 : i32
    %c0_i32_1 = arith.constant 0 : i32
    return %c0_i32, %c0_i32_0 : i32, i32
  }
  func.func @transform_7(%arg0: i32, %arg1: i32) -> (i32, i32) {
    %c0_i32 = arith.constant 0 : i32
    %c0_i32_0 = arith.constant 0 : i32
    return %arg1, %c0_i32 : i32, i32
  }
}

</mosaic_0001>

<llo_original>
// kernel: tpu_custom_call.1
$region0: #{tpu_custom_call.1}
  #allocation0 [shape = 'u32[]', space=smem, size = 0x4, offset = 0x4, fixed_abs, tag = 'smem constant byte address 0x4 - core index']
  #allocation1 [shape = 'u32[144,128]{1,0:T(1,128)}', space=vmem, size = 0x12000, scoped, tag = 'internal scratch']
  #allocation2 [shape = 'f32[1,128]{1,0:T(1,128)}', space=vmem, size = 0x200, scoped, tag = 'scratch operand']
  #allocation3 [shape = 'f32[1,128]{1,0:T(1,128)}', space=vmem, size = 0x200, scoped, tag = 'scratch operand']
  #allocation4 [shape = 'f32[1,128]{1,0:T(1,128)}', space=vmem, size = 0x200, scoped, tag = 'scratch operand']
  #allocation5 [shape = 'f32[1,128]{1,0:T(1,128)}', space=vmem, size = 0x200, scoped, tag = 'scratch operand']
  %s0 = inlined_call_operand.hbm [shape: bf16[8,128], index: 0, kind: input, shape index: {}]
  %s1 = inlined_call_operand.hbm [shape: bf16[128,128], index: 1, kind: input, shape index: {}]
  %s2 = inlined_call_operand.vmem [shape: f32[1,128], index: 2, kind: input, shape index: {}]
  %s3 = inlined_call_operand.vmem [shape: f32[1,128], index: 3, kind: input, shape index: {}]
  %s4 = inlined_call_operand.vmem [shape: f32[1,128], index: 4, kind: input, shape index: {}]
  %s5 = inlined_call_operand.hbm [shape: bf16[128,128], index: 5, kind: input, shape index: {}]
  %s6 = inlined_call_operand.vmem [shape: f32[1,128], index: 6, kind: input, shape index: {}]
  %s7 = inlined_call_operand.hbm [shape: f32[8,128], index: 7, kind: output, shape index: {}]
  %s8 = sld [smem:[#allocation0]]
  $region89: #{tpu_custom_call.1} parent=0
    _
  %s10 = ssub.s32 1, %s8
  %s11 = scalar_select 0, %s10, %s8
  $region1: #{tpu_custom_call.1} parent=0
    #allocation6 [shape = 'u8[2048]{0}', space=vmem, size = 0x800, scoped, tag = 'input window, operand 0, single buffered']
    #allocation7 [shape = 's32[2]{0}', space=sflag, size = 0x8, scoped, tag = 'scoped memory for tpu_custom_call.1']
    #allocation8 [shape = 's32[2]{0}', space=sflag, size = 0x8, scoped, tag = 'scoped memory for tpu_custom_call.1']
    #allocation9 [shape = 'u8[32768]{0}', space=vmem, size = 0x8000, scoped, tag = 'input window, operand 1, single buffered']
    #allocation10 [shape = 's32[1]{0}', space=sflag, size = 0x4, scoped, tag = 'scoped memory for tpu_custom_call.1']
    #allocation11 [shape = 'u8[32768]{0}', space=vmem, size = 0x8000, scoped, tag = 'input window, operand 5, single buffered']
    #allocation12 [shape = 'u8[4096]{0}', space=vmem, size = 0x1000, scoped, tag = 'output window, operand 0, single buffered']
    %12 = vsyncpa [#allocation7], 0
    %13 = vsyncpa [#allocation10], 0
    %14 = vsyncpa [#allocation8], 0
    loop: start=0, step=1, limit=4
    $region2: #{tpu_custom_call.1} parent=1 // loop_pre_header
      _
    $region3: #{tpu_custom_call.1} parent=1 // loop_header
      %s16 = sphi 0, %s20
      %p17 = scmp.ge.s32.totalorder %s16, 4
      %s23 = sphi 0, %s35
      %s24 = sphi 0, %s31
      %s25 = sphi 0, %s23
      %s26 = sphi 0, %s24
      %s27 = sphi 0, %s25
      %s28 = sphi 0, %s26
      %s38 = sphi 0, %s40
      %s41 = sphi 0, %s38
      %s42 = sphi 0, %s41
      %s58 = sphi 0, %s42
      %s62 = sphi 0, %s62
      %s64 = sphi 0, %s62
      %s65 = sphi 0, %s64
      %s79 = sphi 0, %s65
      %s83 = sphi 0, %s83
      %s85 = sphi 0, %s83
      %s86 = sphi 0, %s85
      %s100 = sphi 0, %s86
      %s104 = sphi 0, %s104
      %s106 = sphi 0, %s104
      %s107 = sphi 0, %s106
      %s121 = sphi 0, %s107
      %s125 = sphi 0, %s125
      %s127 = sphi 0, %s125
      %s128 = sphi 0, %s127
      %s142 = sphi 0, %s128
      %s146 = sphi 0, %s146
      %s148 = sphi 0, %s146
      %s149 = sphi 0, %s148
      %s163 = sphi 0, %s149
      %s167 = sphi 0, %s167
      %s169 = sphi 0, %s167
      %s170 = sphi 0, %s169
      %s184 = sphi 0, %s170
      %s190 = sphi 0, %s192
      %s193 = sphi 0, %s190
      %s194 = sphi 0, %s193
      %s210 = sphi 0, %s194
    $region4: #{tpu_custom_call.1} parent=1 // loop_header_branch
      %19 = sbr.rel (%p17) target = $region8
    $region5: #{tpu_custom_call.1} parent=1 // loop_body
      %s21 = ssub.s32 %s16, 1
      %s22 = ssub.s32 %s16, 2
      %s29 = sadd.s32 1, %s24
      %p30 = scmp.ge.s32.totalorder %s29, 1
      %s31 = scalar_select %p30, 0, %s29
      %s32 = sadd.s32 1, %s23
      %s33 = scalar_select %p30, %s32, %s23
      %p34 = scmp.ge.s32.totalorder %s33, 2
      %s35 = scalar_select %p34, 0, %s33
      %s36 = ssub.s32 %s24, %s31
      %p37 = scmp.eq.s32.totalorder %s36, 0
      %s39 = sadd.s32 %s38, 1
      %s40 = scalar_select %p37, %s38, %s39
      %p43 = pneg %p37
      %p44 = scmp.eq.s32.totalorder %s16, 1
      %p45 = por %p43, %p44
      %p46 = scmp.ne.s32.totalorder %s38, %s41
      %p47 = scmp.eq.s32.totalorder %s16, 0
      %p48 = por %p46, %p47
      %p49 = scmp.ne.s32.totalorder %s38, %s41
      %p50 = scmp.eq.s32.totalorder %s21, 1
      %p51 = por %p49, %p50
      %p52 = scmp.ne.s32.totalorder %s41, %s42
      %p53 = scmp.eq.s32.totalorder %s21, 0
      %p54 = por %p52, %p53
      %p55 = scmp.ne.s32.totalorder %s41, %s42
      %p56 = scmp.eq.s32.totalorder %s22, 1
      %p57 = por %p55, %p56
      %p59 = scmp.ne.s32.totalorder %s42, %s58
      %p60 = scmp.eq.s32.totalorder %s22, 0
      %p61 = por %p59, %p60
      %s63 = sadd.s32 %s62, 1
      %p66 = scmp.eq.s32.totalorder %s16, 1
      %p67 = scmp.ne.s32.totalorder %s62, %s64
      %p68 = scmp.eq.s32.totalorder %s16, 0
      %p69 = por %p67, %p68
      %p70 = scmp.ne.s32.totalorder %s62, %s64
      %p71 = scmp.eq.s32.totalorder %s21, 1
      %p72 = por %p70, %p71
      %p73 = scmp.ne.s32.totalorder %s64, %s65
      %p74 = scmp.eq.s32.totalorder %s21, 0
      %p75 = por %p73, %p74
      %p76 = scmp.ne.s32.totalorder %s64, %s65
      %p77 = scmp.eq.s32.totalorder %s22, 1
      %p78 = por %p76, %p77
      %p80 = scmp.ne.s32.totalorder %s65, %s79
      %p81 = scmp.eq.s32.totalorder %s22, 0
      %p82 = por %p80, %p81
      %s84 = sadd.s32 %s83, 1
      %p87 = scmp.eq.s32.totalorder %s16, 1
      %p88 = scmp.ne.s32.totalorder %s83, %s85
      %p89 = scmp.eq.s32.totalorder %s16, 0
      %p90 = por %p88, %p89
      %p91 = scmp.ne.s32.totalorder %s83, %s85
      %p92 = scmp.eq.s32.totalorder %s21, 1
      %p93 = por %p91, %p92
      %p94 = scmp.ne.s32.totalorder %s85, %s86
      %p95 = scmp.eq.s32.totalorder %s21, 0
      %p96 = por %p94, %p95
      %p97 = scmp.ne.s32.totalorder %s85, %s86
      %p98 = scmp.eq.s32.totalorder %s22, 1
      %p99 = por %p97, %p98
      %p101 = scmp.ne.s32.totalorder %s86, %s100
      %p102 = scmp.eq.s32.totalorder %s22, 0
      %p103 = por %p101, %p102
      %s105 = sadd.s32 %s104, 1
      %p108 = scmp.eq.s32.totalorder %s16, 1
      %p109 = scmp.ne.s32.totalorder %s104, %s106
      %p110 = scmp.eq.s32.totalorder %s16, 0
      %p111 = por %p109, %p110
      %p112 = scmp.ne.s32.totalorder %s104, %s106
      %p113 = scmp.eq.s32.totalorder %s21, 1
      %p114 = por %p112, %p113
      %p115 = scmp.ne.s32.totalorder %s106, %s107
      %p116 = scmp.eq.s32.totalorder %s21, 0
      %p117 = por %p115, %p116
      %p118 = scmp.ne.s32.totalorder %s106, %s107
      %p119 = scmp.eq.s32.totalorder %s22, 1
      %p120 = por %p118, %p119
      %p122 = scmp.ne.s32.totalorder %s107, %s121
      %p123 = scmp.eq.s32.totalorder %s22, 0
      %p124 = por %p122, %p123
      %s126 = sadd.s32 %s125, 1
      %p129 = scmp.eq.s32.totalorder %s16, 1
      %p130 = scmp.ne.s32.totalorder %s125, %s127
      %p131 = scmp.eq.s32.totalorder %s16, 0
      %p132 = por %p130, %p131
      %p133 = scmp.ne.s32.totalorder %s125, %s127
      %p134 = scmp.eq.s32.totalorder %s21, 1
      %p135 = por %p133, %p134
      %p136 = scmp.ne.s32.totalorder %s127, %s128
      %p137 = scmp.eq.s32.totalorder %s21, 0
      %p138 = por %p136, %p137
      %p139 = scmp.ne.s32.totalorder %s127, %s128
      %p140 = scmp.eq.s32.totalorder %s22, 1
      %p141 = por %p139, %p140
      %p143 = scmp.ne.s32.totalorder %s128, %s142
      %p144 = scmp.eq.s32.totalorder %s22, 0
      %p145 = por %p143, %p144
      %s147 = sadd.s32 %s146, 1
      %p150 = scmp.eq.s32.totalorder %s16, 1
      %p151 = scmp.ne.s32.totalorder %s146, %s148
      %p152 = scmp.eq.s32.totalorder %s16, 0
      %p153 = por %p151, %p152
      %p154 = scmp.ne.s32.totalorder %s146, %s148
      %p155 = scmp.eq.s32.totalorder %s21, 1
      %p156 = por %p154, %p155
      %p157 = scmp.ne.s32.totalorder %s148, %s149
      %p158 = scmp.eq.s32.totalorder %s21, 0
      %p159 = por %p157, %p158
      %p160 = scmp.ne.s32.totalorder %s148, %s149
      %p161 = scmp.eq.s32.totalorder %s22, 1
      %p162 = por %p160, %p161
      %p164 = scmp.ne.s32.totalorder %s149, %s163
      %p165 = scmp.eq.s32.totalorder %s22, 0
      %p166 = por %p164, %p165
      %s168 = sadd.s32 %s167, 1
      %p171 = scmp.eq.s32.totalorder %s16, 1
      %p172 = scmp.ne.s32.totalorder %s167, %s169
      %p173 = scmp.eq.s32.totalorder %s16, 0
      %p174 = por %p172, %p173
      %p175 = scmp.ne.s32.totalorder %s167, %s169
      %p176 = scmp.eq.s32.totalorder %s21, 1
      %p177 = por %p175, %p176
      %p178 = scmp.ne.s32.totalorder %s169, %s170
      %p179 = scmp.eq.s32.totalorder %s21, 0
      %p180 = por %p178, %p179
      %p181 = scmp.ne.s32.totalorder %s169, %s170
      %p182 = scmp.eq.s32.totalorder %s22, 1
      %p183 = por %p181, %p182
      %p185 = scmp.ne.s32.totalorder %s170, %s184
      %p186 = scmp.eq.s32.totalorder %s22, 0
      %p187 = por %p185, %p186
      %s188 = ssub.s32 %s24, %s31
      %p189 = scmp.eq.s32.totalorder %s188, 0
      %s191 = sadd.s32 %s190, 1
      %s192 = scalar_select %p189, %s190, %s191
      %p195 = pneg %p189
      %p196 = scmp.eq.s32.totalorder %s16, 1
      %p197 = por %p195, %p196
      %p198 = scmp.ne.s32.totalorder %s190, %s193
      %p199 = scmp.eq.s32.totalorder %s16, 0
      %p200 = por %p198, %p199
      %p201 = scmp.ne.s32.totalorder %s190, %s193
      %p202 = scmp.eq.s32.totalorder %s21, 1
      %p203 = por %p201, %p202
      %p204 = scmp.ne.s32.totalorder %s193, %s194
      %p205 = scmp.eq.s32.totalorder %s21, 0
      %p206 = por %p204, %p205
      %p207 = scmp.ne.s32.totalorder %s193, %s194
      %p208 = scmp.eq.s32.totalorder %s22, 1
      %p209 = por %p207, %p208
      %p211 = scmp.ne.s32.totalorder %s194, %s210
      %p212 = scmp.eq.s32.totalorder %s22, 0
      %p213 = por %p211, %p212
      %p214 = scmp.le.s32.totalorder 1, %s16
      %p215 = scmp.lt.s32.totalorder %s16, 3
      %p216 = pnand %p214, %p215
      %p217 = pneg %p216
      // Predicated region
      $region9: #{tpu_custom_call.1} parent=5 // pred_check
        _
      $region10: #{tpu_custom_call.1} parent=5 // pred_check_branch
        %219 = sbr.rel (%p216) target = $region12
      $region11: #{tpu_custom_call.1} parent=5 // pred_region
        %s220 = ssub.s32 %s16, 1
        // Predicated region
        $region13: #{tpu_custom_call.1} parent=11 // pred_check
          %p221 = pneg %p54
        $region14: #{tpu_custom_call.1} parent=11 // pred_check_branch
          %223 = sbr.rel (%p221) target = $region16
        $region15: #{tpu_custom_call.1} parent=11 // pred_region
          %s225 = ssub.s32 64, 64
          %226 = vsyncadd [#allocation7], %s225
          %s227 = smul.addr %s26, 64
          %s228 = scalar_lea.hbm %s0, %s227
          %s230 = sshll.u32 [#allocation6], 4
          %s231 = int_to_ptr.vmem [resolvable:$true] %s230
          %233 = dma.hbm_to_vmem [thread:$0]  %s228, 64, %s231, [#allocation7]
        $region16: #{tpu_custom_call.1} parent=11 // pred_fallthru
          _
        // Predicated region
        $region17: #{tpu_custom_call.1} parent=11 // pred_check
          %p234 = pneg %p75
        $region18: #{tpu_custom_call.1} parent=11 // pred_check_branch
          %236 = sbr.rel (%p234) target = $region20
        $region19: #{tpu_custom_call.1} parent=11 // pred_region
          %s238 = ssub.s32 1024, 1024
          %239 = vsyncadd [#allocation10], %s238
          %s240 = sshll.u32 [#allocation9], 4
          %s241 = int_to_ptr.vmem [resolvable:$true] %s240
          %246 = dma.hbm_to_vmem [thread:$0]  %s1, 1024, %s241, [#allocation10], 64, 64, 4
        $region20: #{tpu_custom_call.1} parent=11 // pred_fallthru
          _
        // Predicated region
        $region21: #{tpu_custom_call.1} parent=11 // pred_check
          %p247 = pneg %p96
        $region22: #{tpu_custom_call.1} parent=11 // pred_check_branch
          %249 = sbr.rel (%p247) target = $region24
        $region23: #{tpu_custom_call.1} parent=11 // pred_region
          _
        $region24: #{tpu_custom_call.1} parent=11 // pred_fallthru
          _
        // Predicated region
        $region25: #{tpu_custom_call.1} parent=11 // pred_check
          %p250 = pneg %p117
        $region26: #{tpu_custom_call.1} parent=11 // pred_check_branch
          %252 = sbr.rel (%p250) target = $region28
        $region27: #{tpu_custom_call.1} parent=11 // pred_region
          _
        $region28: #{tpu_custom_call.1} parent=11 // pred_fallthru
          _
        // Predicated region
        $region29: #{tpu_custom_call.1} parent=11 // pred_check
          %p253 = pneg %p138
        $region30: #{tpu_custom_call.1} parent=11 // pred_check_branch
          %255 = sbr.rel (%p253) target = $region32
        $region31: #{tpu_custom_call.1} parent=11 // pred_region
          _
        $region32: #{tpu_custom_call.1} parent=11 // pred_fallthru
          _
        // Predicated region
        $region33: #{tpu_custom_call.1} parent=11 // pred_check
          %p256 = pneg %p159
        $region34: #{tpu_custom_call.1} parent=11 // pred_check_branch
          %258 = sbr.rel (%p256) target = $region36
        $region35: #{tpu_custom_call.1} parent=11 // pred_region
          %s260 = ssub.s32 1024, 1024
          %261 = vsyncadd [#allocation10], %s260
          %s262 = sshll.u32 [#allocation11], 4
          %s263 = int_to_ptr.vmem [resolvable:$true] %s262
          %268 = dma.hbm_to_vmem [thread:$0]  %s5, 1024, %s263, [#allocation10], 64, 64, 4
        $region36: #{tpu_custom_call.1} parent=11 // pred_fallthru
          _
        // Predicated region
        $region37: #{tpu_custom_call.1} parent=11 // pred_check
          %p269 = pneg %p180
        $region38: #{tpu_custom_call.1} parent=11 // pred_check_branch
          %271 = sbr.rel (%p269) target = $region40
        $region39: #{tpu_custom_call.1} parent=11 // pred_region
          _
        $region40: #{tpu_custom_call.1} parent=11 // pred_fallthru
          _
      $region12: #{tpu_custom_call.1} parent=5 // pred_fallthru
        _
      %p272 = scmp.lt.s32.totalorder %s16, 2
      // Predicated region
      $region41: #{tpu_custom_call.1} parent=5 // pred_check
        %p273 = pneg %p272
      $region42: #{tpu_custom_call.1} parent=5 // pred_check_branch
        %275 = sbr.rel (%p273) target = $region44
      $region43: #{tpu_custom_call.1} parent=5 // pred_region
        _
      $region44: #{tpu_custom_call.1} parent=5 // pred_fallthru
        _
      %p276 = scmp.le.s32.totalorder 1, %s16
      %p277 = scmp.lt.s32.totalorder %s16, 3
      %p278 = pnand %p276, %p277
      %p279 = pneg %p278
      // Predicated region
      $region45: #{tpu_custom_call.1} parent=5 // pred_check
        _
      $region46: #{tpu_custom_call.1} parent=5 // pred_check_branch
        %281 = sbr.rel (%p278) target = $region48
      $region47: #{tpu_custom_call.1} parent=5 // pred_region
        %s282 = ssub.s32 %s16, 1
        // Predicated region
        $region49: #{tpu_custom_call.1} parent=47 // pred_check
          %p283 = pneg %p54
        $region50: #{tpu_custom_call.1} parent=47 // pred_check_branch
          %285 = sbr.rel (%p283) target = $region52
        $region51: #{tpu_custom_call.1} parent=47 // pred_region
          %286 = dma.done [#allocation7], 64
        $region52: #{tpu_custom_call.1} parent=47 // pred_fallthru
          _
        // Predicated region
        $region53: #{tpu_custom_call.1} parent=47 // pred_check
          %p287 = pneg %p75
        $region54: #{tpu_custom_call.1} parent=47 // pred_check_branch
          %289 = sbr.rel (%p287) target = $region56
        $region55: #{tpu_custom_call.1} parent=47 // pred_region
          %290 = dma.done [#allocation10], 1024
        $region56: #{tpu_custom_call.1} parent=47 // pred_fallthru
          _
        // Predicated region
        $region57: #{tpu_custom_call.1} parent=47 // pred_check
          %p291 = pneg %p159
        $region58: #{tpu_custom_call.1} parent=47 // pred_check_branch
          %293 = sbr.rel (%p291) target = $region60
        $region59: #{tpu_custom_call.1} parent=47 // pred_region
          %294 = dma.done [#allocation10], 1024
        $region60: #{tpu_custom_call.1} parent=47 // pred_fallthru
          _
        %p295 = pneg %p54
        %p296 = pneg %p51
        %p297 = pneg %p75
        %p298 = pneg %p72
        %p299 = pneg %p96
        %p300 = pneg %p93
        %p301 = pneg %p117
        %p302 = pneg %p114
        %p303 = pneg %p138
        %p304 = pneg %p135
        %p305 = pneg %p159
        %p306 = pneg %p156
        %p307 = pneg %p180
        %p308 = pneg %p177
        %p309 = pneg %p206
        %p310 = pneg %p203
        %v312 = vld [vmem:[#allocation6] sm:$0xf]
        %v313 = vld [vmem:[#allocation9] sm:$0xf]
        %v314 = vld [vmem:[#allocation9 + $0x4] sm:$0xf]
        %v315 = vld [vmem:[#allocation9 + $0x8] sm:$0xf]
        %v316 = vld [vmem:[#allocation9 + $0xc] sm:$0xf]
        %v317 = vld [vmem:[#allocation9 + $0x10] sm:$0xf]
        %v318 = vld [vmem:[#allocation9 + $0x14] sm:$0xf]
        %v319 = vld [vmem:[#allocation9 + $0x18] sm:$0xf]
        %v320 = vld [vmem:[#allocation9 + $0x1c] sm:$0xf]
        %v321 = vld [vmem:[#allocation9 + $0x20] sm:$0xf]
        %v322 = vld [vmem:[#allocation9 + $0x24] sm:$0xf]
        %v323 = vld [vmem:[#allocation9 + $0x28] sm:$0xf]
        %v324 = vld [vmem:[#allocation9 + $0x2c] sm:$0xf]
        %v325 = vld [vmem:[#allocation9 + $0x30] sm:$0xf]
        %v326 = vld [vmem:[#allocation9 + $0x34] sm:$0xf]
        %v327 = vld [vmem:[#allocation9 + $0x38] sm:$0xf]
        %v328 = vld [vmem:[#allocation9 + $0x3c] sm:$0xf]
        %v329 = vld [vmem:[%s2] sm:$0x1]
        %v331 = vlaneseq
        %v332 = vshrl.u32 %v331, 7
        %v333 = vsub.s32 0, %v332
        %v334 = vrot.slane %v329, %v333
        %v352 = vunpack.c.l.b16 %v313
        %v353 = vunpack.c.l.b16 %v314
        %v354 = vunpack.c.l.b16 %v315
        %v355 = vunpack.c.l.b16 %v316
        %v356 = vunpack.c.l.b16 %v317
        %v357 = vunpack.c.l.b16 %v318
        %v358 = vunpack.c.l.b16 %v319
        %v359 = vunpack.c.l.b16 %v320
        %v360 = vunpack.c.l.b16 %v321
        %v361 = vunpack.c.l.b16 %v322
        %v362 = vunpack.c.l.b16 %v323
        %v363 = vunpack.c.l.b16 %v324
        %v364 = vunpack.c.l.b16 %v325
        %v365 = vunpack.c.l.b16 %v326
        %v366 = vunpack.c.l.b16 %v327
        %v367 = vunpack.c.l.b16 %v328
        %v368 = vpack.c.b16 %v353, %v352
        %v369 = vpack.c.b16 %v355, %v354
        %v370 = vpack.c.b16 %v357, %v356
        %v371 = vpack.c.b16 %v359, %v358
        %v372 = vpack.c.b16 %v361, %v360
        %v373 = vpack.c.b16 %v363, %v362
        %v374 = vpack.c.b16 %v365, %v364
        %v375 = vpack.c.b16 %v367, %v366
        %384 = vmatprep.subr.bf16.mxu0 0
        %385 = vmatpush1.bf16.msra.mxu0 %v368
        %386 = vmatprep.subr.bf16.mxu0 0
        %387 = vmatpush1.bf16.msra.mxu0 %v369
        %388 = vmatprep.subr.bf16.mxu0 0
        %389 = vmatpush1.bf16.msra.mxu0 %v370
        %390 = vmatprep.subr.bf16.mxu0 0
        %391 = vmatpush1.bf16.msra.mxu0 %v371
        %392 = vmatprep.subr.bf16.mxu0 0
        %393 = vmatpush1.bf16.msra.mxu0 %v372
        %394 = vmatprep.subr.bf16.mxu0 0
        %395 = vmatpush1.bf16.msra.mxu0 %v373
        %396 = vmatprep.subr.bf16.mxu0 0
        %397 = vmatpush1.bf16.msra.mxu0 %v374
        %398 = vmatprep.subr.bf16.mxu0 0
        %399 = vmatpush1.bf16.msra.mxu0 %v375
        %400 = vmatprep.subr.bf16.mxu0 0
        %401 = vmatpush1.bf16.msra.mxu0 0
        %402 = vmatprep.subr.bf16.mxu0 0
        %403 = vmatpush1.bf16.msra.mxu0 0
        %404 = vmatprep.subr.bf16.mxu0 0
        %405 = vmatpush1.bf16.msra.mxu0 0
        %406 = vmatprep.subr.bf16.mxu0 0
        %407 = vmatpush1.bf16.msra.mxu0 0
        %408 = vmatprep.subr.bf16.mxu0 0
        %409 = vmatpush1.bf16.msra.mxu0 0
        %410 = vmatprep.subr.bf16.mxu0 0
        %411 = vmatpush1.bf16.msra.mxu0 0
        %412 = vmatprep.subr.bf16.mxu0 0
        %413 = vmatpush1.bf16.msra.mxu0 0
        %414 = vmatprep.subr.bf16.mxu0 0
        %415 = vmatpush1.bf16.msra.mxu0 0
        %416 = vmatprep.mubr.bf16.mxu0 0
        %417 = vmatmul.mubr.bf16.gmra.mrb[0].mxu0 %v312
        %v418 = vpop.f32.mrb[0].mxu0
        %v419 = vadd.f32 %v334, %v418
        %v420 = vpop.f32.mrb[0].mxu0
        %v421 = vpop.f32.mrb[0].mxu0
        %v422 = vpop.f32.mrb[0].mxu0
        %423 = vdwg.mxu0
        %p424 = scmp.eq.s32.totalorder %s25, 0
        %p425 = scmp.eq.s32.totalorder %s26, 0
        %p426 = pnand %p424, %p425
        %p427 = pneg %p426
        // Predicated region
        $region61: #{tpu_custom_call.1} parent=47 // pred_check
          _
        $region62: #{tpu_custom_call.1} parent=47 // pred_check_branch
          %429 = sbr.rel (%p426) target = $region64
        $region63: #{tpu_custom_call.1} parent=47 // pred_region
          %430 = vst [vmem:[#allocation2] sm:$0x1] 0.0
          %431 = vst [vmem:[#allocation3] sm:$0x1] 0.0
        $region64: #{tpu_custom_call.1} parent=47 // pred_fallthru
          _
        // Predicated region
        $region65: #{tpu_custom_call.1} parent=47 // pred_check
          %p432 = pneg %p424
        $region66: #{tpu_custom_call.1} parent=47 // pred_check_branch
          %434 = sbr.rel (%p432) target = $region68
        $region67: #{tpu_custom_call.1} parent=47 // pred_region
          %v435 = vld [vmem:[#allocation2] sm:$0x1]
          %v436 = vrot.slane %v419, 4
          %v437 = vadd.f32 %v419, %v436
          %v438 = vrot.slane %v437, 2
          %v439 = vadd.f32 %v437, %v438
          %v440 = vrot.slane %v439, 1
          %v441 = vadd.f32 %v439, %v440
          %v442 = vadd.f32 %v435, %v441
          %443 = vst [vmem:[#allocation2] sm:$0x1] %v442
          %v444 = vld [vmem:[#allocation3] sm:$0x1]
          %v445 = vmul.f32 %v419, %v419
          %v446 = vrot.slane %v445, 4
          %v447 = vadd.f32 %v445, %v446
          %v448 = vrot.slane %v447, 2
          %v449 = vadd.f32 %v447, %v448
          %v450 = vrot.slane %v449, 1
          %v451 = vadd.f32 %v449, %v450
          %v452 = vadd.f32 %v444, %v451
          %453 = vst [vmem:[#allocation3] sm:$0x1] %v452
          %454 = vst [vmem:[#allocation12] sm:$0xff] 0.0
        $region68: #{tpu_custom_call.1} parent=47 // pred_fallthru
          _
        %p455 = scmp.eq.s32.totalorder %s25, 1
        %p456 = pnand %p455, %p425
        %p457 = pneg %p456
        // Predicated region
        $region69: #{tpu_custom_call.1} parent=47 // pred_check
          _
        $region70: #{tpu_custom_call.1} parent=47 // pred_check_branch
          %459 = sbr.rel (%p456) target = $region72
        $region71: #{tpu_custom_call.1} parent=47 // pred_region
          %v460 = vld [vmem:[#allocation2] sm:$0x1]
          %v461 = vmul.f32 %v460, 0.125
          %v462 = vld [vmem:[#allocation3] sm:$0x1]
          %v463 = vmul.f32 %v462, 0.125
          %v464 = vmul.f32 %v461, %v461
          %v465 = vsub.f32 %v463, %v464
          %v466 = vadd.f32 %v465, 1e-05
          %v467 = vrsqrt.pop %v466
          %v468 = vld [vmem:[%s3] sm:$0x1]
          %v469 = vmul.f32 %v467, %v468
          %470 = vst [vmem:[#allocation4] sm:$0x1] %v469
          %v471 = vld [vmem:[%s4] sm:$0x1]
          %v472 = vmul.f32 %v461, %v469
          %v473 = vsub.f32 %v471, %v472
          %474 = vst [vmem:[#allocation5] sm:$0x1] %v473
        $region72: #{tpu_custom_call.1} parent=47 // pred_fallthru
          _
        // Predicated region
        $region73: #{tpu_custom_call.1} parent=47 // pred_check
          %p475 = pneg %p455
        $region74: #{tpu_custom_call.1} parent=47 // pred_check_branch
          %477 = sbr.rel (%p475) target = $region76
        $region75: #{tpu_custom_call.1} parent=47 // pred_region
          %v478 = vld [vmem:[#allocation4] sm:$0x1]
          %v480 = vlaneseq
          %v481 = vshrl.u32 %v480, 7
          %v482 = vsub.s32 0, %v481
          %v483 = vrot.slane %v478, %v482
          %v485 = vmul.f32 %v419, %v483
          %v486 = vld [vmem:[#allocation5] sm:$0x1]
          %v488 = vlaneseq
          %v489 = vshrl.u32 %v488, 7
          %v490 = vsub.s32 0, %v489
          %v491 = vrot.slane %v486, %v490
          %v493 = vadd.f32 %v485, %v491
          %vm494 = vcmp.gt.f32.partialorder %v493, 0.0
          %v495 = vmul.f32 %v493, 0.01
          %v496 = vsel %vm494, %v493, %v495
          %v497 = vpack.c.bf16 %v496, %v496
          %v498 = vld [vmem:[#allocation11] sm:$0xf]
          %v499 = vld [vmem:[#allocation11 + $0x4] sm:$0xf]
          %v500 = vld [vmem:[#allocation11 + $0x8] sm:$0xf]
          %v501 = vld [vmem:[#allocation11 + $0xc] sm:$0xf]
          %v502 = vld [vmem:[#allocation11 + $0x10] sm:$0xf]
          %v503 = vld [vmem:[#allocation11 + $0x14] sm:$0xf]
          %v504 = vld [vmem:[#allocation11 + $0x18] sm:$0xf]
          %v505 = vld [vmem:[#allocation11 + $0x1c] sm:$0xf]
          %v506 = vld [vmem:[#allocation11 + $0x20] sm:$0xf]
          %v507 = vld [vmem:[#allocation11 + $0x24] sm:$0xf]
          %v508 = vld [vmem:[#allocation11 + $0x28] sm:$0xf]
          %v509 = vld [vmem:[#allocation11 + $0x2c] sm:$0xf]
          %v510 = vld [vmem:[#allocation11 + $0x30] sm:$0xf]
          %v511 = vld [vmem:[#allocation11 + $0x34] sm:$0xf]
          %v512 = vld [vmem:[#allocation11 + $0x38] sm:$0xf]
          %v513 = vld [vmem:[#allocation11 + $0x3c] sm:$0xf]
          %v514 = vld [vmem:[%s6] sm:$0x1]
          %v516 = vlaneseq
          %v517 = vshrl.u32 %v516, 7
          %v518 = vsub.s32 0, %v517
          %v519 = vrot.slane %v514, %v518
          %v537 = vunpack.c.l.b16 %v498
          %v538 = vunpack.c.l.b16 %v499
          %v539 = vunpack.c.l.b16 %v500
          %v540 = vunpack.c.l.b16 %v501
          %v541 = vunpack.c.l.b16 %v502
          %v542 = vunpack.c.l.b16 %v503
          %v543 = vunpack.c.l.b16 %v504
          %v544 = vunpack.c.l.b16 %v505
          %v545 = vunpack.c.l.b16 %v506
          %v546 = vunpack.c.l.b16 %v507
          %v547 = vunpack.c.l.b16 %v508
          %v548 = vunpack.c.l.b16 %v509
          %v549 = vunpack.c.l.b16 %v510
          %v550 = vunpack.c.l.b16 %v511
          %v551 = vunpack.c.l.b16 %v512
          %v552 = vunpack.c.l.b16 %v513
          %v553 = vpack.c.b16 %v538, %v537
          %v554 = vpack.c.b16 %v540, %v539
          %v555 = vpack.c.b16 %v542, %v541
          %v556 = vpack.c.b16 %v544, %v543
          %v557 = vpack.c.b16 %v546, %v545
          %v558 = vpack.c.b16 %v548, %v547
          %v559 = vpack.c.b16 %v550, %v549
          %v560 = vpack.c.b16 %v552, %v551
          %569 = vmatprep.subr.bf16.mxu0 0
          %570 = vmatpush1.bf16.msra.mxu0 %v553
          %571 = vmatprep.subr.bf16.mxu0 0
          %572 = vmatpush1.bf16.msra.mxu0 %v554
          %573 = vmatprep.subr.bf16.mxu0 0
          %574 = vmatpush1.bf16.msra.mxu0 %v555
          %575 = vmatprep.subr.bf16.mxu0 0
          %576 = vmatpush1.bf16.msra.mxu0 %v556
          %577 = vmatprep.subr.bf16.mxu0 0
          %578 = vmatpush1.bf16.msra.mxu0 %v557
          %579 = vmatprep.subr.bf16.mxu0 0
          %580 = vmatpush1.bf16.msra.mxu0 %v558
          %581 = vmatprep.subr.bf16.mxu0 0
          %582 = vmatpush1.bf16.msra.mxu0 %v559
          %583 = vmatprep.subr.bf16.mxu0 0
          %584 = vmatpush1.bf16.msra.mxu0 %v560
          %585 = vmatprep.subr.bf16.mxu0 0
          %586 = vmatpush1.bf16.msra.mxu0 0
          %587 = vmatprep.subr.bf16.mxu0 0
          %588 = vmatpush1.bf16.msra.mxu0 0
          %589 = vmatprep.subr.bf16.mxu0 0
          %590 = vmatpush1.bf16.msra.mxu0 0
          %591 = vmatprep.subr.bf16.mxu0 0
          %592 = vmatpush1.bf16.msra.mxu0 0
          %593 = vmatprep.subr.bf16.mxu0 0
          %594 = vmatpush1.bf16.msra.mxu0 0
          %595 = vmatprep.subr.bf16.mxu0 0
          %596 = vmatpush1.bf16.msra.mxu0 0
          %597 = vmatprep.subr.bf16.mxu0 0
          %598 = vmatpush1.bf16.msra.mxu0 0
          %599 = vmatprep.subr.bf16.mxu0 0
          %600 = vmatpush1.bf16.msra.mxu0 0
          %601 = vmatprep.mubr.bf16.mxu0 0
          %602 = vmatmul.mubr.bf16.gmra.mrb[0].mxu0 %v497
          %v603 = vpop.f32.mrb[0].mxu0
          %v604 = vadd.f32 %v519, %v603
          %v605 = vpop.f32.mrb[0].mxu0
          %v606 = vpop.f32.mrb[0].mxu0
          %v607 = vpop.f32.mrb[0].mxu0
          %608 = vdwg.mxu0
          %609 = vst [vmem:[#allocation12] sm:$0xff] %v604
        $region76: #{tpu_custom_call.1} parent=47 // pred_fallthru
          _
        // Predicated region
        $region77: #{tpu_custom_call.1} parent=47 // pred_check
          %p610 = pneg %p203
        $region78: #{tpu_custom_call.1} parent=47 // pred_check_branch
          %612 = sbr.rel (%p610) target = $region80
        $region79: #{tpu_custom_call.1} parent=47 // pred_region
          %s614 = ssub.s32 128, 128
          %615 = vsyncadd [#allocation8], %s614
          %s616 = smul.addr %s26, 128
          %s617 = scalar_lea.hbm %s7, %s616
          %s619 = sshll.u32 [#allocation12], 4
          %s620 = int_to_ptr.vmem [resolvable:$true] %s619
          %622 = dma.vmem_to_hbm [thread:$0]  %s620, 128, %s617, [#allocation8]
        $region80: #{tpu_custom_call.1} parent=47 // pred_fallthru
          _
        // Predicated region
        $region81: #{tpu_custom_call.1} parent=47 // pred_check
          %p623 = pneg %p203
        $region82: #{tpu_custom_call.1} parent=47 // pred_check_branch
          %625 = sbr.rel (%p623) target = $region84
        $region83: #{tpu_custom_call.1} parent=47 // pred_region
          %626 = dma.done [#allocation8], 128
        $region84: #{tpu_custom_call.1} parent=47 // pred_fallthru
          _
      $region48: #{tpu_custom_call.1} parent=5 // pred_fallthru
        _
      %p627 = scmp.le.s32.totalorder 2, %s16
      // Predicated region
      $region85: #{tpu_custom_call.1} parent=5 // pred_check
        %p628 = pneg %p627
      $region86: #{tpu_custom_call.1} parent=5 // pred_check_branch
        %630 = sbr.rel (%p628) target = $region88
      $region87: #{tpu_custom_call.1} parent=5 // pred_region
        %s631 = ssub.s32 %s16, 2
      $region88: #{tpu_custom_call.1} parent=5 // pred_fallthru
        _
    $region6: #{tpu_custom_call.1} parent=1 // loop_footer
      %s20 = sadd.s32 1, %s16
    $region7: #{tpu_custom_call.1} parent=1 // loop_footer_branch
      %15 = sbr.rel target = $region3
    $region8: #{tpu_custom_call.1} parent=1 // loop_exit
      _
    %632 = vsyncpa [#allocation7], 1
    %s633 = scalar_lea.sflag [#allocation7], 1
    %634 = vsyncpa %s633, 1
    %635 = vsyncpa [#allocation10], 1
    %636 = vsyncpa [#allocation8], 1
    %s637 = scalar_lea.sflag [#allocation8], 1
    %638 = vsyncpa %s637, 1

</llo_original>
